<compile_context>
chip_gen: v7x
topology: tpu7x:2x2x1
jax: 0.10.0
libtpu: 0.0.40
codegen_flags: <defaults>
</compile_context>

<pallas_src>
import functools

import jax
import jax.numpy as jnp
from jax.experimental import pallas as pl
from jax.experimental.pallas import tpu as pltpu


def _fcn_kernel(x_ref, w1_ref, b1_ref, wh_ref, bh_ref, w2_ref, b2_ref, o_ref,
                *, n_hidden_layers):
    """One batch tile of the full MLP, feature-major (batch on the lane axis).

    x_ref : (N_INPUT, TM)
    w1_ref: (H, N_INPUT)          b1_ref: (H, 1)
    wh_ref: (L-1, H, H)           bh_ref: (L-1, H, 1)
    w2_ref: (N_OUTPUT, H)         b2_ref: (N_OUTPUT, 1)
    o_ref : (N_OUTPUT, TM)
    """
    x = x_ref[...]                      # already f32; no astype needed
    w1 = w1_ref[...]

    if w1.shape[1] == 1:
        # K = N_INPUT = 1: a matmul here is a degenerate outer product that only
        # costs MXU push/pop latency -- do it on the VPU as a broadcast multiply.
        h = w1 * x                      # (H, 1) * (1, TM) -> (H, TM)
    else:
        h = jnp.dot(w1, x, preferred_element_type=jnp.float32)
    # NOTE: verify jnp.tanh lowers to the native EUP tanh on v5e (pl.lower_as_mlir).
    h = jnp.tanh(h + b1_ref[...])

    # Hidden layers: h <- tanh(W_l @ h + b_l), all lane-dense (H, TM) activations.
    if n_hidden_layers <= 8:
        # Shallow: fully unrolled straight-line code (compile-time constant count).
        for l in range(n_hidden_layers):
            h = jnp.tanh(
                jnp.dot(wh_ref[l], h, preferred_element_type=jnp.float32)
                + bh_ref[l]
            )
    else:
        # Deep: visible loop with small unroll so vreg live ranges stay bounded.
        def body(l, hh):
            return jnp.tanh(
                jnp.dot(wh_ref[l], hh, preferred_element_type=jnp.float32)
                + bh_ref[l]
            )
        h = jax.lax.fori_loop(0, n_hidden_layers, body, h, unroll=2)

    # Output layer (linear): (N_OUTPUT, H) @ (H, TM) -> lane-dense (N_OUTPUT, TM).
    out = jnp.dot(w2_ref[...], h, preferred_element_type=jnp.float32) + b2_ref[...]
    o_ref[...] = out.astype(o_ref.dtype)


def fcn_forward(x, params, *, tm=512):
    """FCN forward pass via one Pallas TPU kernel.

    x: (N, N_INPUT) float32 (batch-major, PyTorch convention). Any N (padded inside).
    params: (w1, b1, wh, bh, w2, b2) in PyTorch (out_features, in_features) layout:
        w1: (H, N_INPUT),   b1: (H, 1)
        wh: (L-1, H, H),    bh: (L-1, H, 1)
        w2: (N_OUTPUT, H),  b2: (N_OUTPUT, 1)
    """
    w1, b1, wh, bh, w2, b2 = params
    n, n_in = x.shape
    n_hidden_layers, hdim, _ = wh.shape
    n_out = w2.shape[0]

    # Batch tile: multiple of 128 (lane width).  Keep grid length >= 2 when the
    # batch allows it so ("parallel",) can shard tiles across both v7x TensorCores.
    # tm=512 keeps the (H, TM) f32 activation at ~16 vregs (no spills at H=32).
    if n > 128:
        tm = min(tm, 128 * pl.cdiv(pl.cdiv(n, 2), 128))
    else:
        tm = min(tm, 128)
    n_padded = tm * pl.cdiv(n, tm)

    # Feature-major input; zero-pad the batch (lane) axis to a tile multiple.
    x_t = jnp.pad(x.T, ((0, 0), (0, n_padded - n)))

    kernel = functools.partial(_fcn_kernel, n_hidden_layers=n_hidden_layers)

    # Weight/bias blocks have constant index_maps (grid-invariant), so they are
    # DMA'd once and stay resident; total resident weights are <10 KiB on any chip.
    out_t = pl.pallas_call(
        kernel,
        out_shape=jax.ShapeDtypeStruct((n_out, n_padded), jnp.float32),
        grid=(n_padded // tm,),
        in_specs=[
            pl.BlockSpec((n_in, tm), lambda i: (0, i)),                        # x  (tiled on lanes)
            pl.BlockSpec((hdim, n_in), lambda i: (0, 0)),                      # w1 (full)
            pl.BlockSpec((hdim, 1), lambda i: (0, 0)),                         # b1 (full)
            pl.BlockSpec((n_hidden_layers, hdim, hdim), lambda i: (0, 0, 0)),  # wh (full)
            pl.BlockSpec((n_hidden_layers, hdim, 1), lambda i: (0, 0, 0)),     # bh (full)
            pl.BlockSpec((n_out, hdim), lambda i: (0, 0)),                     # w2 (full)
            pl.BlockSpec((n_out, 1), lambda i: (0, 0)),                        # b2 (full)
        ],
        out_specs=pl.BlockSpec((n_out, tm), lambda i: (0, i)),
        compiler_params=pltpu.CompilerParams(
            dimension_semantics=("parallel",),
        ),
    )(x_t, w1, b1, wh, bh, w2, b2)

    return out_t[:, :n].T


def init_fcn_params(key, n_input, n_output, n_hidden, n_layers):
    """Deterministic init mimicking nn.Linear's U(-1/sqrt(fan_in), 1/sqrt(fan_in)).

    Weights are stored in PyTorch layout (out_features, in_features); biases as
    (out_features, 1) columns (feature-major, ready for the transposed kernel).
    """
    assert n_layers >= 2, "need at least one hidden block (N_LAYERS >= 2)"
    ks = jax.random.split(key, 2 * (n_layers + 1))
    ki = iter(ks)

    def linear(kw, kb, fan_in, fan_out):
        bound = 1.0 / (fan_in ** 0.5)
        w = jax.random.uniform(kw, (fan_out, fan_in), jnp.float32, -bound, bound)
        b = jax.random.uniform(kb, (fan_out, 1), jnp.float32, -bound, bound)
        return w, b

    w1, b1 = linear(next(ki), next(ki), n_input, n_hidden)

    wh_list, bh_list = [], []
    for _ in range(n_layers - 1):
        w, b = linear(next(ki), next(ki), n_hidden, n_hidden)
        wh_list.append(w)
        bh_list.append(b)
    wh = jnp.stack(wh_list, axis=0)   # (L-1, H, H)
    bh = jnp.stack(bh_list, axis=0)   # (L-1, H, 1)

    w2, b2 = linear(next(ki), next(ki), n_hidden, n_output)
    return w1, b1, wh, bh, w2, b2


def fcn_reference(x, params):
    """Plain-JAX reference of the same forward pass (batch-major, PyTorch semantics)."""
    w1, b1, wh, bh, w2, b2 = params
    h = jnp.tanh(x @ w1.T + b1.T)
    for l in range(wh.shape[0]):
        h = jnp.tanh(h @ wh[l].T + bh[l].T)
    return h @ w2.T + b2.T


if __name__ == "__main__":
    # Shapes from the PINN spec: x = torch.linspace(0, 1, 500).view(-1, 1),
    # FCN(1, 1, 32, 3).  BATCH=500 is not a tile multiple -> exercises padding.
    N_INPUT, N_OUTPUT, N_HIDDEN, N_LAYERS = 1, 1, 32, 3
    BATCH = 500

    key = jax.random.PRNGKey(0)
    pkey, _ = jax.random.split(key)

    params = init_fcn_params(pkey, N_INPUT, N_OUTPUT, N_HIDDEN, N_LAYERS)
    x = jnp.linspace(0.0, 1.0, BATCH, dtype=jnp.float32).reshape(-1, 1)

    out = jax.block_until_ready(fcn_forward(x, params))
    ref = fcn_reference(x, params)

    assert out.shape == (BATCH, N_OUTPUT), out.shape
    max_err = float(jnp.max(jnp.abs(out - ref)))
    assert jnp.allclose(out, ref, atol=1e-5, rtol=1e-5), max_err

    print("KERNEL_OK")
</pallas_src>

<mosaic_0001>
module attributes {stable_mosaic.version = 11 : i64} {
  func.func @_fcn_kernel(%arg0: i32, %arg1: memref<1x256xf32, #tpu.memory_space<vmem>>, %arg2: memref<32x1xf32, #tpu.memory_space<vmem>>, %arg3: memref<32x1xf32, #tpu.memory_space<vmem>>, %arg4: memref<2x32x32xf32, #tpu.memory_space<vmem>>, %arg5: memref<2x32x1xf32, #tpu.memory_space<vmem>>, %arg6: memref<1x32xf32, #tpu.memory_space<vmem>>, %arg7: memref<1x1xf32, #tpu.memory_space<vmem>>, %arg8: memref<1x256xf32, #tpu.memory_space<vmem>>) attributes {dimension_semantics = [#tpu.dimension_semantics<parallel>], iteration_bounds = array<i64: 2>, scalar_prefetch = 0 : i64, scratch_operands = 0 : i64, tpu.core_type = #tpu.core_type<tc>, window_params = [{transform_indices = @transform_0, window_bounds = array<i64: 1, 256>}, {pipeline_mode = #tpu.pipeline_mode<synchronous>, transform_indices = @transform_1, window_bounds = array<i64: 32, 1>}, {pipeline_mode = #tpu.pipeline_mode<synchronous>, transform_indices = @transform_2, window_bounds = array<i64: 32, 1>}, {pipeline_mode = #tpu.pipeline_mode<synchronous>, transform_indices = @transform_3, window_bounds = array<i64: 2, 32, 32>}, {pipeline_mode = #tpu.pipeline_mode<synchronous>, transform_indices = @transform_4, window_bounds = array<i64: 2, 32, 1>}, {pipeline_mode = #tpu.pipeline_mode<synchronous>, transform_indices = @transform_5, window_bounds = array<i64: 1, 32>}, {pipeline_mode = #tpu.pipeline_mode<synchronous>, transform_indices = @transform_6, window_bounds = array<i64: 1, 1>}, {transform_indices = @transform_7, window_bounds = array<i64: 1, 256>}]} {
    %c0 = arith.constant 0 : index
    %c0_0 = arith.constant 0 : index
    %0 = vector.load %arg1[%c0, %c0_0] : memref<1x256xf32, #tpu.memory_space<vmem>>, vector<1x256xf32>
    %c0_1 = arith.constant 0 : index
    %c0_2 = arith.constant 0 : index
    %1 = vector.load %arg2[%c0_1, %c0_2] : memref<32x1xf32, #tpu.memory_space<vmem>>, vector<32x1xf32>
    %2 = vector.broadcast %1 : vector<32x1xf32> to vector<32x256xf32>
    %3 = vector.broadcast %0 : vector<1x256xf32> to vector<32x256xf32>
    %4 = arith.mulf %2, %3 : vector<32x256xf32>
    %c0_3 = arith.constant 0 : index
    %c0_4 = arith.constant 0 : index
    %5 = vector.load %arg3[%c0_3, %c0_4] : memref<32x1xf32, #tpu.memory_space<vmem>>, vector<32x1xf32>
    %6 = vector.broadcast %5 : vector<32x1xf32> to vector<32x256xf32>
    %7 = arith.addf %4, %6 : vector<32x256xf32>
    %8 = math.tanh %7 : vector<32x256xf32>
    %c0_5 = arith.constant 0 : index
    %c0_6 = arith.constant 0 : index
    %c0_7 = arith.constant 0 : index
    %9 = vector.load %arg4[%c0_5, %c0_6, %c0_7] : memref<2x32x32xf32, #tpu.memory_space<vmem>>, vector<1x32x32xf32>
    %10 = vector.shape_cast %9 : vector<1x32x32xf32> to vector<32x32xf32>
    %cst = arith.constant dense<0.000000e+00> : vector<32x256xf32>
    %11 = tpu.matmul %10, %8, %cst {dimension_numbers = #tpu.dot_dimension_numbers<[1], [0], [0], [1], [0, 0, 1, 1], [], []>} : vector<32x32xf32>, vector<32x256xf32>, vector<32x256xf32> -> vector<32x256xf32>
    %c0_8 = arith.constant 0 : index
    %c0_9 = arith.constant 0 : index
    %c0_10 = arith.constant 0 : index
    %12 = vector.load %arg5[%c0_8, %c0_9, %c0_10] : memref<2x32x1xf32, #tpu.memory_space<vmem>>, vector<1x32x1xf32>
    %13 = vector.shape_cast %12 : vector<1x32x1xf32> to vector<32x1xf32>
    %14 = vector.broadcast %13 : vector<32x1xf32> to vector<32x256xf32>
    %15 = arith.addf %11, %14 : vector<32x256xf32>
    %16 = math.tanh %15 : vector<32x256xf32>
    %c1 = arith.constant 1 : index
    %c0_11 = arith.constant 0 : index
    %c0_12 = arith.constant 0 : index
    %17 = vector.load %arg4[%c1, %c0_11, %c0_12] : memref<2x32x32xf32, #tpu.memory_space<vmem>>, vector<1x32x32xf32>
    %18 = vector.shape_cast %17 : vector<1x32x32xf32> to vector<32x32xf32>
    %cst_13 = arith.constant dense<0.000000e+00> : vector<32x256xf32>
    %19 = tpu.matmul %18, %16, %cst_13 {dimension_numbers = #tpu.dot_dimension_numbers<[1], [0], [0], [1], [0, 0, 1, 1], [], []>} : vector<32x32xf32>, vector<32x256xf32>, vector<32x256xf32> -> vector<32x256xf32>
    %c1_14 = arith.constant 1 : index
    %c0_15 = arith.constant 0 : index
    %c0_16 = arith.constant 0 : index
    %20 = vector.load %arg5[%c1_14, %c0_15, %c0_16] : memref<2x32x1xf32, #tpu.memory_space<vmem>>, vector<1x32x1xf32>
    %21 = vector.shape_cast %20 : vector<1x32x1xf32> to vector<32x1xf32>
    %22 = vector.broadcast %21 : vector<32x1xf32> to vector<32x256xf32>
    %23 = arith.addf %19, %22 : vector<32x256xf32>
    %24 = math.tanh %23 : vector<32x256xf32>
    %c0_17 = arith.constant 0 : index
    %c0_18 = arith.constant 0 : index
    %25 = vector.load %arg6[%c0_17, %c0_18] : memref<1x32xf32, #tpu.memory_space<vmem>>, vector<1x32xf32>
    %cst_19 = arith.constant dense<0.000000e+00> : vector<1x256xf32>
    %26 = tpu.matmul %25, %24, %cst_19 {dimension_numbers = #tpu.dot_dimension_numbers<[1], [0], [0], [1], [0, 0, 1, 1], [], []>} : vector<1x32xf32>, vector<32x256xf32>, vector<1x256xf32> -> vector<1x256xf32>
    %c0_20 = arith.constant 0 : index
    %c0_21 = arith.constant 0 : index
    %27 = vector.load %arg7[%c0_20, %c0_21] : memref<1x1xf32, #tpu.memory_space<vmem>>, vector<1x1xf32>
    %28 = vector.broadcast %27 : vector<1x1xf32> to vector<1x256xf32>
    %29 = arith.addf %26, %28 : vector<1x256xf32>
    %c0_22 = arith.constant 0 : index
    %c0_23 = arith.constant 0 : index
    %30 = vector.load %arg8[%c0_22, %c0_23] : memref<1x256xf32, #tpu.memory_space<vmem>>, vector<1x256xf32>
    tpu.vector_store %arg8[%c0_22, %c0_23], %29 {strides = array<i32>} : memref<1x256xf32, #tpu.memory_space<vmem>>, vector<1x256xf32>,
    return
  }
  func.func @transform_0(%arg0: i32) -> (i32, i32) {
    %c0_i32 = arith.constant 0 : i32
    %c0_i32_0 = arith.constant 0 : i32
    return %c0_i32, %arg0 : i32, i32
  }
  func.func @transform_1(%arg0: i32) -> (i32, i32) {
    %c0_i32 = arith.constant 0 : i32
    %c0_i32_0 = arith.constant 0 : i32
    %c0_i32_1 = arith.constant 0 : i32
    return %c0_i32, %c0_i32_0 : i32, i32
  }
  func.func @transform_2(%arg0: i32) -> (i32, i32) {
    %c0_i32 = arith.constant 0 : i32
    %c0_i32_0 = arith.constant 0 : i32
    %c0_i32_1 = arith.constant 0 : i32
    return %c0_i32, %c0_i32_0 : i32, i32
  }
  func.func @transform_3(%arg0: i32) -> (i32, i32, i32) {
    %c0_i32 = arith.constant 0 : i32
    %c0_i32_0 = arith.constant 0 : i32
    %c0_i32_1 = arith.constant 0 : i32
    %c0_i32_2 = arith.constant 0 : i32
    return %c0_i32, %c0_i32_0, %c0_i32_1 : i32, i32, i32
  }
  func.func @transform_4(%arg0: i32) -> (i32, i32, i32) {
    %c0_i32 = arith.constant 0 : i32
    %c0_i32_0 = arith.constant 0 : i32
    %c0_i32_1 = arith.constant 0 : i32
    %c0_i32_2 = arith.constant 0 : i32
    return %c0_i32, %c0_i32_0, %c0_i32_1 : i32, i32, i32
  }
  func.func @transform_5(%arg0: i32) -> (i32, i32) {
    %c0_i32 = arith.constant 0 : i32
    %c0_i32_0 = arith.constant 0 : i32
    %c0_i32_1 = arith.constant 0 : i32
    return %c0_i32, %c0_i32_0 : i32, i32
  }
  func.func @transform_6(%arg0: i32) -> (i32, i32) {
    %c0_i32 = arith.constant 0 : i32
    %c0_i32_0 = arith.constant 0 : i32
    %c0_i32_1 = arith.constant 0 : i32
    return %c0_i32, %c0_i32_0 : i32, i32
  }
  func.func @transform_7(%arg0: i32) -> (i32, i32) {
    %c0_i32 = arith.constant 0 : i32
    %c0_i32_0 = arith.constant 0 : i32
    return %c0_i32, %arg0 : i32, i32
  }
}

</mosaic_0001>

<llo_original>
// kernel: tpu_custom_call.1
$region0: #{tpu_custom_call.1}
  #allocation0 [shape = 'u32[]', space=smem, size = 0x4, offset = 0x4, fixed_abs, tag = 'smem constant byte address 0x4 - core index']
  #allocation1 [shape = 'u32[144,128]{1,0:T(1,128)}', space=vmem, size = 0x12000, scoped, tag = 'internal scratch']
  #allocation2 [shape = 'f32[1,1]{1,0:T(1,128)S(1)}', space=vmem, size = 0x200, scoped, tag = 'scoped memory for tpu_custom_call.1']
  %s0 = inlined_call_operand.vmem [shape: f32[1,512], index: 0, kind: input, shape index: {}]
  %s1 = inlined_call_operand.vmem [shape: f32[32,1], index: 1, kind: input, shape index: {}]
  %s2 = inlined_call_operand.vmem [shape: f32[32,1], index: 2, kind: input, shape index: {}]
  %s3 = inlined_call_operand.vmem [shape: f32[2,32,32], index: 3, kind: input, shape index: {}]
  %s4 = inlined_call_operand.vmem [shape: f32[2,32,1], index: 4, kind: input, shape index: {}]
  %s5 = inlined_call_operand.vmem [shape: f32[1,32], index: 5, kind: input, shape index: {}]
  %s6 = inlined_call_operand.<no memory space> [shape: f32[1,1], index: 6, kind: input, shape index: {}]
  %s7 = inlined_call_operand.hbm [shape: f32[1,512], index: 7, kind: output, shape index: {}]
  %s8 = sld [smem:[#allocation0]]
  $region61: #{tpu_custom_call.1} parent=0
    _
  %s10 = ssub.s32 1, %s8
  %s11 = scalar_select 0, %s10, %s8
  %v12 = vstv %s6
  %13 = vst [vmem:[#allocation2] sm:$0x1] %v12
  $region1: #{tpu_custom_call.1} parent=0
    #allocation3 [shape = 'u8[2048]{0}', space=vmem, size = 0x800, scoped, tag = 'output window, operand 0']
    #allocation4 [shape = 's32[2]{0}', space=sflag, size = 0x8, scoped, tag = 'scoped memory for tpu_custom_call.1']
    %14 = vsyncpa [#allocation4], 0
    %s15 = scalar_lea.sflag [#allocation4], 1
    %16 = vsyncpa %s15, 0
    loop: start=0, step=1, limit=4
    $region2: #{tpu_custom_call.1} parent=1 // loop_pre_header
      _
    $region3: #{tpu_custom_call.1} parent=1 // loop_header
      %s18 = sphi 0, %s22
      %p19 = scmp.ge.s32.totalorder %s18, 4
      %s28 = sphi 0, %s30
      %s31 = sphi 0, %s28
      %s32 = sphi 0, %s31
      %s48 = sphi 0, %s32
      %s52 = sphi 0, %s52
      %s54 = sphi 0, %s52
      %s55 = sphi 0, %s54
      %s69 = sphi 0, %s55
      %s73 = sphi 0, %s73
      %s75 = sphi 0, %s73
      %s76 = sphi 0, %s75
      %s90 = sphi 0, %s76
      %s94 = sphi 0, %s94
      %s96 = sphi 0, %s94
      %s97 = sphi 0, %s96
      %s111 = sphi 0, %s97
      %s115 = sphi 0, %s115
      %s117 = sphi 0, %s115
      %s118 = sphi 0, %s117
      %s132 = sphi 0, %s118
      %s136 = sphi 0, %s136
      %s138 = sphi 0, %s136
      %s139 = sphi 0, %s138
      %s153 = sphi 0, %s139
      %s157 = sphi 0, %s157
      %s159 = sphi 0, %s157
      %s160 = sphi 0, %s159
      %s174 = sphi 0, %s160
      %s180 = sphi 0, %s182
      %s183 = sphi 0, %s180
      %s184 = sphi 0, %s183
      %s200 = sphi 0, %s184
    $region4: #{tpu_custom_call.1} parent=1 // loop_header_branch
      %21 = sbr.rel (%p19) target = $region8
    $region5: #{tpu_custom_call.1} parent=1 // loop_body
      %s23 = ssub.s32 %s18, 1
      %s24 = ssub.s32 %s18, 2
      %s25 = sadd.s32 %s18, 1
      %s26 = ssub.s32 %s18, %s25
      %p27 = scmp.eq.s32.totalorder %s26, 0
      %s29 = sadd.s32 %s28, 1
      %s30 = scalar_select %p27, %s28, %s29
      %p33 = pneg %p27
      %p34 = scmp.eq.s32.totalorder %s18, 1
      %p35 = por %p33, %p34
      %p36 = scmp.ne.s32.totalorder %s28, %s31
      %p37 = scmp.eq.s32.totalorder %s18, 0
      %p38 = por %p36, %p37
      %p39 = scmp.ne.s32.totalorder %s28, %s31
      %p40 = scmp.eq.s32.totalorder %s23, 1
      %p41 = por %p39, %p40
      %p42 = scmp.ne.s32.totalorder %s31, %s32
      %p43 = scmp.eq.s32.totalorder %s23, 0
      %p44 = por %p42, %p43
      %p45 = scmp.ne.s32.totalorder %s31, %s32
      %p46 = scmp.eq.s32.totalorder %s24, 1
      %p47 = por %p45, %p46
      %p49 = scmp.ne.s32.totalorder %s32, %s48
      %p50 = scmp.eq.s32.totalorder %s24, 0
      %p51 = por %p49, %p50
      %s53 = sadd.s32 %s52, 1
      %p56 = scmp.eq.s32.totalorder %s18, 1
      %p57 = scmp.ne.s32.totalorder %s52, %s54
      %p58 = scmp.eq.s32.totalorder %s18, 0
      %p59 = por %p57, %p58
      %p60 = scmp.ne.s32.totalorder %s52, %s54
      %p61 = scmp.eq.s32.totalorder %s23, 1
      %p62 = por %p60, %p61
      %p63 = scmp.ne.s32.totalorder %s54, %s55
      %p64 = scmp.eq.s32.totalorder %s23, 0
      %p65 = por %p63, %p64
      %p66 = scmp.ne.s32.totalorder %s54, %s55
      %p67 = scmp.eq.s32.totalorder %s24, 1
      %p68 = por %p66, %p67
      %p70 = scmp.ne.s32.totalorder %s55, %s69
      %p71 = scmp.eq.s32.totalorder %s24, 0
      %p72 = por %p70, %p71
      %s74 = sadd.s32 %s73, 1
      %p77 = scmp.eq.s32.totalorder %s18, 1
      %p78 = scmp.ne.s32.totalorder %s73, %s75
      %p79 = scmp.eq.s32.totalorder %s18, 0
      %p80 = por %p78, %p79
      %p81 = scmp.ne.s32.totalorder %s73, %s75
      %p82 = scmp.eq.s32.totalorder %s23, 1
      %p83 = por %p81, %p82
      %p84 = scmp.ne.s32.totalorder %s75, %s76
      %p85 = scmp.eq.s32.totalorder %s23, 0
      %p86 = por %p84, %p85
      %p87 = scmp.ne.s32.totalorder %s75, %s76
      %p88 = scmp.eq.s32.totalorder %s24, 1
      %p89 = por %p87, %p88
      %p91 = scmp.ne.s32.totalorder %s76, %s90
      %p92 = scmp.eq.s32.totalorder %s24, 0
      %p93 = por %p91, %p92
      %s95 = sadd.s32 %s94, 1
      %p98 = scmp.eq.s32.totalorder %s18, 1
      %p99 = scmp.ne.s32.totalorder %s94, %s96
      %p100 = scmp.eq.s32.totalorder %s18, 0
      %p101 = por %p99, %p100
      %p102 = scmp.ne.s32.totalorder %s94, %s96
      %p103 = scmp.eq.s32.totalorder %s23, 1
      %p104 = por %p102, %p103
      %p105 = scmp.ne.s32.totalorder %s96, %s97
      %p106 = scmp.eq.s32.totalorder %s23, 0
      %p107 = por %p105, %p106
      %p108 = scmp.ne.s32.totalorder %s96, %s97
      %p109 = scmp.eq.s32.totalorder %s24, 1
      %p110 = por %p108, %p109
      %p112 = scmp.ne.s32.totalorder %s97, %s111
      %p113 = scmp.eq.s32.totalorder %s24, 0
      %p114 = por %p112, %p113
      %s116 = sadd.s32 %s115, 1
      %p119 = scmp.eq.s32.totalorder %s18, 1
      %p120 = scmp.ne.s32.totalorder %s115, %s117
      %p121 = scmp.eq.s32.totalorder %s18, 0
      %p122 = por %p120, %p121
      %p123 = scmp.ne.s32.totalorder %s115, %s117
      %p124 = scmp.eq.s32.totalorder %s23, 1
      %p125 = por %p123, %p124
      %p126 = scmp.ne.s32.totalorder %s117, %s118
      %p127 = scmp.eq.s32.totalorder %s23, 0
      %p128 = por %p126, %p127
      %p129 = scmp.ne.s32.totalorder %s117, %s118
      %p130 = scmp.eq.s32.totalorder %s24, 1
      %p131 = por %p129, %p130
      %p133 = scmp.ne.s32.totalorder %s118, %s132
      %p134 = scmp.eq.s32.totalorder %s24, 0
      %p135 = por %p133, %p134
      %s137 = sadd.s32 %s136, 1
      %p140 = scmp.eq.s32.totalorder %s18, 1
      %p141 = scmp.ne.s32.totalorder %s136, %s138
      %p142 = scmp.eq.s32.totalorder %s18, 0
      %p143 = por %p141, %p142
      %p144 = scmp.ne.s32.totalorder %s136, %s138
      %p145 = scmp.eq.s32.totalorder %s23, 1
      %p146 = por %p144, %p145
      %p147 = scmp.ne.s32.totalorder %s138, %s139
      %p148 = scmp.eq.s32.totalorder %s23, 0
      %p149 = por %p147, %p148
      %p150 = scmp.ne.s32.totalorder %s138, %s139
      %p151 = scmp.eq.s32.totalorder %s24, 1
      %p152 = por %p150, %p151
      %p154 = scmp.ne.s32.totalorder %s139, %s153
      %p155 = scmp.eq.s32.totalorder %s24, 0
      %p156 = por %p154, %p155
      %s158 = sadd.s32 %s157, 1
      %p161 = scmp.eq.s32.totalorder %s18, 1
      %p162 = scmp.ne.s32.totalorder %s157, %s159
      %p163 = scmp.eq.s32.totalorder %s18, 0
      %p164 = por %p162, %p163
      %p165 = scmp.ne.s32.totalorder %s157, %s159
      %p166 = scmp.eq.s32.totalorder %s23, 1
      %p167 = por %p165, %p166
      %p168 = scmp.ne.s32.totalorder %s159, %s160
      %p169 = scmp.eq.s32.totalorder %s23, 0
      %p170 = por %p168, %p169
      %p171 = scmp.ne.s32.totalorder %s159, %s160
      %p172 = scmp.eq.s32.totalorder %s24, 1
      %p173 = por %p171, %p172
      %p175 = scmp.ne.s32.totalorder %s160, %s174
      %p176 = scmp.eq.s32.totalorder %s24, 0
      %p177 = por %p175, %p176
      %s178 = ssub.s32 %s18, %s25
      %p179 = scmp.eq.s32.totalorder %s178, 0
      %s181 = sadd.s32 %s180, 1
      %s182 = scalar_select %p179, %s180, %s181
      %p185 = pneg %p179
      %p186 = scmp.eq.s32.totalorder %s18, 1
      %p187 = por %p185, %p186
      %p188 = scmp.ne.s32.totalorder %s180, %s183
      %p189 = scmp.eq.s32.totalorder %s18, 0
      %p190 = por %p188, %p189
      %p191 = scmp.ne.s32.totalorder %s180, %s183
      %p192 = scmp.eq.s32.totalorder %s23, 1
      %p193 = por %p191, %p192
      %p194 = scmp.ne.s32.totalorder %s183, %s184
      %p195 = scmp.eq.s32.totalorder %s23, 0
      %p196 = por %p194, %p195
      %p197 = scmp.ne.s32.totalorder %s183, %s184
      %p198 = scmp.eq.s32.totalorder %s24, 1
      %p199 = por %p197, %p198
      %p201 = scmp.ne.s32.totalorder %s184, %s200
      %p202 = scmp.eq.s32.totalorder %s24, 0
      %p203 = por %p201, %p202
      %p204 = scmp.le.s32.totalorder 1, %s18
      %p205 = scmp.lt.s32.totalorder %s18, 3
      %p206 = pnand %p204, %p205
      %p207 = pneg %p206
      // Predicated region
      $region9: #{tpu_custom_call.1} parent=5 // pred_check
        _
      $region10: #{tpu_custom_call.1} parent=5 // pred_check_branch
        %209 = sbr.rel (%p206) target = $region12
      $region11: #{tpu_custom_call.1} parent=5 // pred_region
        %s210 = ssub.s32 %s18, 1
        // Predicated region
        $region13: #{tpu_custom_call.1} parent=11 // pred_check
          %p211 = pneg %p65
        $region14: #{tpu_custom_call.1} parent=11 // pred_check_branch
          %213 = sbr.rel (%p211) target = $region16
        $region15: #{tpu_custom_call.1} parent=11 // pred_region
          _
        $region16: #{tpu_custom_call.1} parent=11 // pred_fallthru
          _
        // Predicated region
        $region17: #{tpu_custom_call.1} parent=11 // pred_check
          %p214 = pneg %p86
        $region18: #{tpu_custom_call.1} parent=11 // pred_check_branch
          %216 = sbr.rel (%p214) target = $region20
        $region19: #{tpu_custom_call.1} parent=11 // pred_region
          _
        $region20: #{tpu_custom_call.1} parent=11 // pred_fallthru
          _
        // Predicated region
        $region21: #{tpu_custom_call.1} parent=11 // pred_check
          %p217 = pneg %p107
        $region22: #{tpu_custom_call.1} parent=11 // pred_check_branch
          %219 = sbr.rel (%p217) target = $region24
        $region23: #{tpu_custom_call.1} parent=11 // pred_region
          _
        $region24: #{tpu_custom_call.1} parent=11 // pred_fallthru
          _
        // Predicated region
        $region25: #{tpu_custom_call.1} parent=11 // pred_check
          %p220 = pneg %p128
        $region26: #{tpu_custom_call.1} parent=11 // pred_check_branch
          %222 = sbr.rel (%p220) target = $region28
        $region27: #{tpu_custom_call.1} parent=11 // pred_region
          _
        $region28: #{tpu_custom_call.1} parent=11 // pred_fallthru
          _
        // Predicated region
        $region29: #{tpu_custom_call.1} parent=11 // pred_check
          %p223 = pneg %p149
        $region30: #{tpu_custom_call.1} parent=11 // pred_check_branch
          %225 = sbr.rel (%p223) target = $region32
        $region31: #{tpu_custom_call.1} parent=11 // pred_region
          _
        $region32: #{tpu_custom_call.1} parent=11 // pred_fallthru
          _
        // Predicated region
        $region33: #{tpu_custom_call.1} parent=11 // pred_check
          %p226 = pneg %p170
        $region34: #{tpu_custom_call.1} parent=11 // pred_check_branch
          %228 = sbr.rel (%p226) target = $region36
        $region35: #{tpu_custom_call.1} parent=11 // pred_region
          _
        $region36: #{tpu_custom_call.1} parent=11 // pred_fallthru
          _
      $region12: #{tpu_custom_call.1} parent=5 // pred_fallthru
        _
      %p229 = scmp.lt.s32.totalorder %s18, 2
      // Predicated region
      $region37: #{tpu_custom_call.1} parent=5 // pred_check
        %p230 = pneg %p229
      $region38: #{tpu_custom_call.1} parent=5 // pred_check_branch
        %232 = sbr.rel (%p230) target = $region40
      $region39: #{tpu_custom_call.1} parent=5 // pred_region
        // Predicated region
        $region41: #{tpu_custom_call.1} parent=39 // pred_check
          %p233 = pneg %p38
        $region42: #{tpu_custom_call.1} parent=39 // pred_check_branch
          %235 = sbr.rel (%p233) target = $region44
        $region43: #{tpu_custom_call.1} parent=39 // pred_region
          %s236 = smul.u32 2, %s18
          %p237 = scmp.lt.s32.totalorder %s236, 3
          %s238 = scalar_select %p237, %s236, 3
          %s239 = scalar_lea.vmem %s0, %s238
          %s240 = smul.u32 2, %s18
        $region44: #{tpu_custom_call.1} parent=39 // pred_fallthru
          _
      $region40: #{tpu_custom_call.1} parent=5 // pred_fallthru
        _
      %p241 = scmp.le.s32.totalorder 1, %s18
      %p242 = scmp.lt.s32.totalorder %s18, 3
      %p243 = pnand %p241, %p242
      %p244 = pneg %p243
      // Predicated region
      $region45: #{tpu_custom_call.1} parent=5 // pred_check
        _
      $region46: #{tpu_custom_call.1} parent=5 // pred_check_branch
        %246 = sbr.rel (%p243) target = $region48
      $region47: #{tpu_custom_call.1} parent=5 // pred_region
        %s247 = ssub.s32 %s18, 1
        %s248 = smul.u32 2, %s23
        %p249 = scmp.lt.s32.totalorder %s248, 3
        %s250 = scalar_select %p249, %s248, 3
        %s251 = scalar_lea.vmem %s0, %s250
        %p252 = pneg %p44
        %p253 = pneg %p41
        %p254 = pneg %p65
        %p255 = pneg %p62
        %p256 = pneg %p86
        %p257 = pneg %p83
        %p258 = pneg %p107
        %p259 = pneg %p104
        %p260 = pneg %p128
        %p261 = pneg %p125
        %p262 = pneg %p149
        %p263 = pneg %p146
        %p264 = pneg %p170
        %p265 = pneg %p167
        %p266 = pneg %p196
        %p267 = pneg %p193
        %s268 = sand.u32 %s183, 1
        %s269 = scalar_lea.sflag [#allocation4], %s268
        %s270 = sand.u32 %s183, 1
        %s271 = smul.addr %s270, 2
        %s272 = scalar_lea.vmem [#allocation3], %s271
        %s273 = smul.u32 2, %s23
        %p274 = scmp.lt.s32.totalorder %s273, 3
        %s275 = scalar_select %p274, %s273, 3
        %s276 = scalar_lea.vmem %s0, %s275
        %s277 = smul.u32 2, %s23
        %s278 = smul.u32 2, %s23
        %v279 = vld [vmem:[%s276] sm:$0x3]
        %v280 = vld [vmem:[%s1] sm:$0xff]
        %v281 = vld [vmem:[%s1 + $0x8] sm:$0xff]
        %v282 = vld [vmem:[%s1 + $0x10] sm:$0xff]
        %v283 = vld [vmem:[%s1 + $0x18] sm:$0xff]
        %285 = vset.pattern.permute.xlu0 0
        %286 = vperm.xlu0 %285, %v280
        %v287 = vpop.permute.xlu0 %286
        %290 = vset.pattern.permute.xlu0 0
        %291 = vperm.xlu0 %290, %v281
        %v292 = vpop.permute.xlu0 %291
        %295 = vset.pattern.permute.xlu0 0
        %296 = vperm.xlu0 %295, %v282
        %v297 = vpop.permute.xlu0 %296
        %300 = vset.pattern.permute.xlu0 0
        %301 = vperm.xlu0 %300, %v283
        %v302 = vpop.permute.xlu0 %301
        %v305 = vlaneseq
        %v306 = vshrl.u32 %v305, 7
        %v307 = vsub.s32 0, %v306
        %v308 = vrot.slane %v279, %v307
        %v309 = vlaneseq
        %v310 = vshrl.u32 %v309, 7
        %v311 = vsub.s32 1, %v310
        %v312 = vrot.slane %v279, %v311
        %v315 = vmul.f32 %v287, %v308
        %v316 = vmul.f32 %v287, %v312
        %v317 = vmul.f32 %v292, %v308
        %v318 = vmul.f32 %v292, %v312
        %v319 = vmul.f32 %v297, %v308
        %v320 = vmul.f32 %v297, %v312
        %v321 = vmul.f32 %v302, %v308
        %v322 = vmul.f32 %v302, %v312
        %v323 = vld [vmem:[%s2] sm:$0xff]
        %v324 = vld [vmem:[%s2 + $0x8] sm:$0xff]
        %v325 = vld [vmem:[%s2 + $0x10] sm:$0xff]
        %v326 = vld [vmem:[%s2 + $0x18] sm:$0xff]
        %328 = vset.pattern.permute.xlu0 0
        %329 = vperm.xlu0 %328, %v323
        %v330 = vpop.permute.xlu0 %329
        %333 = vset.pattern.permute.xlu0 0
        %334 = vperm.xlu0 %333, %v324
        %v335 = vpop.permute.xlu0 %334
        %338 = vset.pattern.permute.xlu0 0
        %339 = vperm.xlu0 %338, %v325
        %v340 = vpop.permute.xlu0 %339
        %343 = vset.pattern.permute.xlu0 0
        %344 = vperm.xlu0 %343, %v326
        %v345 = vpop.permute.xlu0 %344
        %v347 = vadd.f32 %v315, %v330
        %v348 = vadd.f32 %v316, %v330
        %v349 = vadd.f32 %v317, %v335
        %v350 = vadd.f32 %v318, %v335
        %v351 = vadd.f32 %v319, %v340
        %v352 = vadd.f32 %v320, %v340
        %v353 = vadd.f32 %v321, %v345
        %v354 = vadd.f32 %v322, %v345
        %v355 = vtanh.pop %v347
        %v356 = vtanh.pop %v348
        %v357 = vtanh.pop %v349
        %v358 = vtanh.pop %v350
        %v359 = vtanh.pop %v351
        %v360 = vtanh.pop %v352
        %v361 = vtanh.pop %v353
        %v362 = vtanh.pop %v354
        %v363 = vld [vmem:[%s3] sm:$0xff]
        %v364 = vld [vmem:[%s3 + $0x8] sm:$0xff]
        %v365 = vld [vmem:[%s3 + $0x10] sm:$0xff]
        %v366 = vld [vmem:[%s3 + $0x18] sm:$0xff]
        %v367 = vld [vmem:[%s4] sm:$0xff]
        %v368 = vld [vmem:[%s4 + $0x8] sm:$0xff]
        %v369 = vld [vmem:[%s4 + $0x10] sm:$0xff]
        %v370 = vld [vmem:[%s4 + $0x18] sm:$0xff]
        %372 = vset.pattern.permute.xlu0 0
        %373 = vperm.xlu0 %372, %v367
        %v374 = vpop.permute.xlu0 %373
        %377 = vset.pattern.permute.xlu0 0
        %378 = vperm.xlu0 %377, %v368
        %v379 = vpop.permute.xlu0 %378
        %382 = vset.pattern.permute.xlu0 0
        %383 = vperm.xlu0 %382, %v369
        %v384 = vpop.permute.xlu0 %383
        %387 = vset.pattern.permute.xlu0 0
        %388 = vperm.xlu0 %387, %v370
        %v389 = vpop.permute.xlu0 %388
        %vm391 = vcmask 261120
        %v393 = vsel %vm391, %v363, 0
        %v396 = vsel %vm391, %v364, 0
        %v399 = vsel %vm391, %v365, 0
        %v402 = vsel %vm391, %v366, 0
        %404 = vmatprep.subr.mxu0 %v356
        %405 = vmatpush1.msra.mxu0 %v355
        %406 = vmatprep.subr.mxu0 %v358
        %407 = vmatpush1.msra.mxu0 %v357
        %408 = vmatprep.subr.mxu0 %v360
        %409 = vmatpush1.msra.mxu0 %v359
        %410 = vmatprep.subr.mxu0 %v362
        %411 = vmatpush1.msra.mxu0 %v361
        %412 = vmatprep.subr.mxu0 0.0
        %413 = vmatpush1.msra.mxu0 0.0
        %414 = vmatprep.subr.mxu0 0.0
        %415 = vmatpush1.msra.mxu0 0.0
        %416 = vmatprep.subr.mxu0 0.0
        %417 = vmatpush1.msra.mxu0 0.0
        %418 = vmatprep.subr.mxu0 0.0
        %419 = vmatpush1.msra.mxu0 0.0
        %420 = vmatprep.subr.mxu0 0.0
        %421 = vmatpush1.msra.mxu0 0.0
        %422 = vmatprep.subr.mxu0 0.0
        %423 = vmatpush1.msra.mxu0 0.0
        %424 = vmatprep.subr.mxu0 0.0
        %425 = vmatpush1.msra.mxu0 0.0
        %426 = vmatprep.subr.mxu0 0.0
        %427 = vmatpush1.msra.mxu0 0.0
        %428 = vmatprep.subr.mxu0 0.0
        %429 = vmatpush1.msra.mxu0 0.0
        %430 = vmatprep.subr.mxu0 0.0
        %431 = vmatpush1.msra.mxu0 0.0
        %432 = vmatprep.subr.mxu0 0.0
        %433 = vmatpush1.msra.mxu0 0.0
        %434 = vmatprep.subr.mxu0 0.0
        %435 = vmatpush1.msra.mxu0 0.0
        %436 = vmatprep.subr.mxu0 0.0
        %437 = vmatpush1.msra.mxu0 0.0
        %438 = vmatprep.subr.mxu0 0.0
        %439 = vmatpush1.msra.mxu0 0.0
        %440 = vmatprep.subr.mxu0 0.0
        %441 = vmatpush1.msra.mxu0 0.0
        %442 = vmatprep.subr.mxu0 0.0
        %443 = vmatpush1.msra.mxu0 0.0
        %444 = vmatprep.subr.mxu0 0.0
        %445 = vmatpush1.msra.mxu0 0.0
        %446 = vmatprep.subr.mxu0 0.0
        %447 = vmatpush1.msra.mxu0 0.0
        %448 = vmatprep.subr.mxu0 0.0
        %449 = vmatpush1.msra.mxu0 0.0
        %450 = vmatprep.subr.mxu0 0.0
        %451 = vmatpush1.msra.mxu0 0.0
        %452 = vmatprep.subr.mxu0 0.0
        %453 = vmatpush1.msra.mxu0 0.0
        %454 = vmatprep.subr.mxu0 0.0
        %455 = vmatpush1.msra.mxu0 0.0
        %456 = vmatprep.subr.mxu0 0.0
        %457 = vmatpush1.msra.mxu0 0.0
        %458 = vmatprep.subr.mxu0 0.0
        %459 = vmatpush1.msra.mxu0 0.0
        %460 = vmatprep.subr.mxu0 0.0
        %461 = vmatpush1.msra.mxu0 0.0
        %462 = vmatprep.subr.mxu0 0.0
        %463 = vmatpush1.msra.mxu0 0.0
        %464 = vmatprep.subr.mxu0 0.0
        %465 = vmatpush1.msra.mxu0 0.0
        %466 = vmatprep.subr.mxu0 0.0
        %467 = vmatpush1.msra.mxu0 0.0
        %468 = vmatprep.mubr.f32.mxu0 0.0
        %469 = vmatmul.mubr.f32.gmra.mrb[0].mxu0 %v393
        %v470 = vpop.f32.mrb[0].mxu0
        %v471 = vadd.f32 %v374, %v470
        %v472 = vpop.f32.mrb[0].mxu0
        %v473 = vadd.f32 %v374, %v472
        %474 = vmatprep.mubr.f32.mxu0 0.0
        %475 = vmatmul.mubr.f32.gmra.mrb[0].mxu0 %v396
        %v476 = vpop.f32.mrb[0].mxu0
        %v477 = vadd.f32 %v379, %v476
        %v478 = vpop.f32.mrb[0].mxu0
        %v479 = vadd.f32 %v379, %v478
        %480 = vmatprep.mubr.f32.mxu0 0.0
        %481 = vmatmul.mubr.f32.gmra.mrb[0].mxu0 %v399
        %v482 = vpop.f32.mrb[0].mxu0
        %v483 = vadd.f32 %v384, %v482
        %v484 = vpop.f32.mrb[0].mxu0
        %v485 = vadd.f32 %v384, %v484
        %486 = vmatprep.mubr.f32.mxu0 0.0
        %487 = vmatmul.mubr.f32.gmra.mrb[0].mxu0 %v402
        %v488 = vpop.f32.mrb[0].mxu0
        %v489 = vadd.f32 %v389, %v488
        %v490 = vpop.f32.mrb[0].mxu0
        %v491 = vadd.f32 %v389, %v490
        %492 = vdwg.mxu0
        %v493 = vtanh.pop %v471
        %v494 = vtanh.pop %v473
        %v495 = vtanh.pop %v477
        %v496 = vtanh.pop %v479
        %v497 = vtanh.pop %v483
        %v498 = vtanh.pop %v485
        %v499 = vtanh.pop %v489
        %v500 = vtanh.pop %v491
        %s501 = scalar_lea.vmem %s3, 32
        %v502 = vld [vmem:[%s501] sm:$0xff]
        %v503 = vld [vmem:[%s501 + $0x8] sm:$0xff]
        %v504 = vld [vmem:[%s501 + $0x10] sm:$0xff]
        %v505 = vld [vmem:[%s501 + $0x18] sm:$0xff]
        %s506 = scalar_lea.vmem %s4, 32
        %v507 = vld [vmem:[%s506] sm:$0xff]
        %v508 = vld [vmem:[%s506 + $0x8] sm:$0xff]
        %v509 = vld [vmem:[%s506 + $0x10] sm:$0xff]
        %v510 = vld [vmem:[%s506 + $0x18] sm:$0xff]
        %512 = vset.pattern.permute.xlu0 0
        %513 = vperm.xlu0 %512, %v507
        %v514 = vpop.permute.xlu0 %513
        %517 = vset.pattern.permute.xlu0 0
        %518 = vperm.xlu0 %517, %v508
        %v519 = vpop.permute.xlu0 %518
        %522 = vset.pattern.permute.xlu0 0
        %523 = vperm.xlu0 %522, %v509
        %v524 = vpop.permute.xlu0 %523
        %527 = vset.pattern.permute.xlu0 0
        %528 = vperm.xlu0 %527, %v510
        %v529 = vpop.permute.xlu0 %528
        %v532 = vsel %vm391, %v502, 0
        %v535 = vsel %vm391, %v503, 0
        %v538 = vsel %vm391, %v504, 0
        %v541 = vsel %vm391, %v505, 0
        %543 = vmatprep.subr.mxu0 %v494
        %544 = vmatpush1.msra.mxu0 %v493
        %545 = vmatprep.subr.mxu0 %v496
        %546 = vmatpush1.msra.mxu0 %v495
        %547 = vmatprep.subr.mxu0 %v498
        %548 = vmatpush1.msra.mxu0 %v497
        %549 = vmatprep.subr.mxu0 %v500
        %550 = vmatpush1.msra.mxu0 %v499
        %551 = vmatprep.subr.mxu0 0.0
        %552 = vmatpush1.msra.mxu0 0.0
        %553 = vmatprep.subr.mxu0 0.0
        %554 = vmatpush1.msra.mxu0 0.0
        %555 = vmatprep.subr.mxu0 0.0
        %556 = vmatpush1.msra.mxu0 0.0
        %557 = vmatprep.subr.mxu0 0.0
        %558 = vmatpush1.msra.mxu0 0.0
        %559 = vmatprep.subr.mxu0 0.0
        %560 = vmatpush1.msra.mxu0 0.0
        %561 = vmatprep.subr.mxu0 0.0
        %562 = vmatpush1.msra.mxu0 0.0
        %563 = vmatprep.subr.mxu0 0.0
        %564 = vmatpush1.msra.mxu0 0.0
        %565 = vmatprep.subr.mxu0 0.0
        %566 = vmatpush1.msra.mxu0 0.0
        %567 = vmatprep.subr.mxu0 0.0
        %568 = vmatpush1.msra.mxu0 0.0
        %569 = vmatprep.subr.mxu0 0.0
        %570 = vmatpush1.msra.mxu0 0.0
        %571 = vmatprep.subr.mxu0 0.0
        %572 = vmatpush1.msra.mxu0 0.0
        %573 = vmatprep.subr.mxu0 0.0
        %574 = vmatpush1.msra.mxu0 0.0
        %575 = vmatprep.subr.mxu0 0.0
        %576 = vmatpush1.msra.mxu0 0.0
        %577 = vmatprep.subr.mxu0 0.0
        %578 = vmatpush1.msra.mxu0 0.0
        %579 = vmatprep.subr.mxu0 0.0
        %580 = vmatpush1.msra.mxu0 0.0
        %581 = vmatprep.subr.mxu0 0.0
        %582 = vmatpush1.msra.mxu0 0.0
        %583 = vmatprep.subr.mxu0 0.0
        %584 = vmatpush1.msra.mxu0 0.0
        %585 = vmatprep.subr.mxu0 0.0
        %586 = vmatpush1.msra.mxu0 0.0
        %587 = vmatprep.subr.mxu0 0.0
        %588 = vmatpush1.msra.mxu0 0.0
        %589 = vmatprep.subr.mxu0 0.0
        %590 = vmatpush1.msra.mxu0 0.0
        %591 = vmatprep.subr.mxu0 0.0
        %592 = vmatpush1.msra.mxu0 0.0
        %593 = vmatprep.subr.mxu0 0.0
        %594 = vmatpush1.msra.mxu0 0.0
        %595 = vmatprep.subr.mxu0 0.0
        %596 = vmatpush1.msra.mxu0 0.0
        %597 = vmatprep.subr.mxu0 0.0
        %598 = vmatpush1.msra.mxu0 0.0
        %599 = vmatprep.subr.mxu0 0.0
        %600 = vmatpush1.msra.mxu0 0.0
        %601 = vmatprep.subr.mxu0 0.0
        %602 = vmatpush1.msra.mxu0 0.0
        %603 = vmatprep.subr.mxu0 0.0
        %604 = vmatpush1.msra.mxu0 0.0
        %605 = vmatprep.subr.mxu0 0.0
        %606 = vmatpush1.msra.mxu0 0.0
        %607 = vmatprep.mubr.f32.mxu0 0.0
        %608 = vmatmul.mubr.f32.gmra.mrb[0].mxu0 %v532
        %v609 = vpop.f32.mrb[0].mxu0
        %v610 = vadd.f32 %v514, %v609
        %v611 = vpop.f32.mrb[0].mxu0
        %v612 = vadd.f32 %v514, %v611
        %613 = vmatprep.mubr.f32.mxu0 0.0
        %614 = vmatmul.mubr.f32.gmra.mrb[0].mxu0 %v535
        %v615 = vpop.f32.mrb[0].mxu0
        %v616 = vadd.f32 %v519, %v615
        %v617 = vpop.f32.mrb[0].mxu0
        %v618 = vadd.f32 %v519, %v617
        %619 = vmatprep.mubr.f32.mxu0 0.0
        %620 = vmatmul.mubr.f32.gmra.mrb[0].mxu0 %v538
        %v621 = vpop.f32.mrb[0].mxu0
        %v622 = vadd.f32 %v524, %v621
        %v623 = vpop.f32.mrb[0].mxu0
        %v624 = vadd.f32 %v524, %v623
        %625 = vmatprep.mubr.f32.mxu0 0.0
        %626 = vmatmul.mubr.f32.gmra.mrb[0].mxu0 %v541
        %v627 = vpop.f32.mrb[0].mxu0
        %v628 = vadd.f32 %v529, %v627
        %v629 = vpop.f32.mrb[0].mxu0
        %v630 = vadd.f32 %v529, %v629
        %631 = vdwg.mxu0
        %v632 = vtanh.pop %v610
        %v633 = vtanh.pop %v612
        %v634 = vtanh.pop %v616
        %v635 = vtanh.pop %v618
        %v636 = vtanh.pop %v622
        %v637 = vtanh.pop %v624
        %v638 = vtanh.pop %v628
        %v639 = vtanh.pop %v630
        %v640 = vld [vmem:[%s5] sm:$0x1]
        %v641 = vld [vmem:[#allocation2] sm:$0x1]
        %643 = vset.pattern.permute.xlu0 0
        %644 = vperm.xlu0 %643, %v641
        %v645 = vpop.permute.xlu0 %644
        %v647 = vlaneseq
        %v648 = vshrl.u32 %v647, 7
        %v649 = vsub.s32 0, %v648
        %v650 = vrot.slane %v645, %v649
        %v652 = vsel %vm391, %v640, 0
        %654 = vmatprep.subr.mxu0 %v633
        %655 = vmatpush1.msra.mxu0 %v632
        %656 = vmatprep.subr.mxu0 %v635
        %657 = vmatpush1.msra.mxu0 %v634
        %658 = vmatprep.subr.mxu0 %v637
        %659 = vmatpush1.msra.mxu0 %v636
        %660 = vmatprep.subr.mxu0 %v639
        %661 = vmatpush1.msra.mxu0 %v638
        %662 = vmatprep.subr.mxu0 0.0
        %663 = vmatpush1.msra.mxu0 0.0
        %664 = vmatprep.subr.mxu0 0.0
        %665 = vmatpush1.msra.mxu0 0.0
        %666 = vmatprep.subr.mxu0 0.0
        %667 = vmatpush1.msra.mxu0 0.0
        %668 = vmatprep.subr.mxu0 0.0
        %669 = vmatpush1.msra.mxu0 0.0
        %670 = vmatprep.subr.mxu0 0.0
        %671 = vmatpush1.msra.mxu0 0.0
        %672 = vmatprep.subr.mxu0 0.0
        %673 = vmatpush1.msra.mxu0 0.0
        %674 = vmatprep.subr.mxu0 0.0
        %675 = vmatpush1.msra.mxu0 0.0
        %676 = vmatprep.subr.mxu0 0.0
        %677 = vmatpush1.msra.mxu0 0.0
        %678 = vmatprep.subr.mxu0 0.0
        %679 = vmatpush1.msra.mxu0 0.0
        %680 = vmatprep.subr.mxu0 0.0
        %681 = vmatpush1.msra.mxu0 0.0
        %682 = vmatprep.subr.mxu0 0.0
        %683 = vmatpush1.msra.mxu0 0.0
        %684 = vmatprep.subr.mxu0 0.0
        %685 = vmatpush1.msra.mxu0 0.0
        %686 = vmatprep.subr.mxu0 0.0
        %687 = vmatpush1.msra.mxu0 0.0
        %688 = vmatprep.subr.mxu0 0.0
        %689 = vmatpush1.msra.mxu0 0.0
        %690 = vmatprep.subr.mxu0 0.0
        %691 = vmatpush1.msra.mxu0 0.0
        %692 = vmatprep.subr.mxu0 0.0
        %693 = vmatpush1.msra.mxu0 0.0
        %694 = vmatprep.subr.mxu0 0.0
        %695 = vmatpush1.msra.mxu0 0.0
        %696 = vmatprep.subr.mxu0 0.0
        %697 = vmatpush1.msra.mxu0 0.0
        %698 = vmatprep.subr.mxu0 0.0
        %699 = vmatpush1.msra.mxu0 0.0
        %700 = vmatprep.subr.mxu0 0.0
        %701 = vmatpush1.msra.mxu0 0.0
        %702 = vmatprep.subr.mxu0 0.0
        %703 = vmatpush1.msra.mxu0 0.0
        %704 = vmatprep.subr.mxu0 0.0
        %705 = vmatpush1.msra.mxu0 0.0
        %706 = vmatprep.subr.mxu0 0.0
        %707 = vmatpush1.msra.mxu0 0.0
        %708 = vmatprep.subr.mxu0 0.0
        %709 = vmatpush1.msra.mxu0 0.0
        %710 = vmatprep.subr.mxu0 0.0
        %711 = vmatpush1.msra.mxu0 0.0
        %712 = vmatprep.subr.mxu0 0.0
        %713 = vmatpush1.msra.mxu0 0.0
        %714 = vmatprep.subr.mxu0 0.0
        %715 = vmatpush1.msra.mxu0 0.0
        %716 = vmatprep.subr.mxu0 0.0
        %717 = vmatpush1.msra.mxu0 0.0
        %718 = vmatprep.mubr.f32.mxu0 0.0
        %719 = vmatmul.mubr.f32.gmra.mrb[0].mxu0 %v652
        %v720 = vpop.f32.mrb[0].mxu0
        %v721 = vadd.f32 %v650, %v720
        %v722 = vpop.f32.mrb[0].mxu0
        %v723 = vadd.f32 %v650, %v722
        %724 = vdwg.mxu0
        %v727 = vcombine.low %v721, %v723
        %v729 = vunpack.c.l.s4 1966171168
        %v730 = vunpack.c.0.s8 %v729
        %v731 = vlaneseq
        %v732 = vshrl.u32 %v731, 7
        %v733 = vsub.s32 %v730, %v732
        %v734 = vrot.slane %v727, %v733
        %v736 = vunpack.c.l.s4 1966171168
        %v737 = vunpack.c.0.s8 %v736
        %v738 = vlaneseq
        %v739 = vshrl.u32 %v738, 7
        %v740 = vsub.s32 %v737, %v739
        %v741 = vrot.slane %v734, %v740
        %v743 = vlaneseq
        %vm744 = vcmp.ge.s32.totalorder %v743, 0
        %vm745 = vcmp.lt.s32.totalorder %v743, 256
        %vm746 = vmand %vm744, %vm745
        %747 = vst.msk [vmem:[%s272] sm:$0x3] %vm746, %v741
        %s748 = sand.u32 %s183, 1
        %s749 = scalar_lea.sflag [#allocation4], %s748
        %s750 = sand.u32 %s183, 1
        %s751 = smul.addr %s750, 2
        %s752 = scalar_lea.vmem [#allocation3], %s751
        // Predicated region
        $region49: #{tpu_custom_call.1} parent=47 // pred_check
          %p753 = pneg %p193
        $region50: #{tpu_custom_call.1} parent=47 // pred_check_branch
          %755 = sbr.rel (%p753) target = $region52
        $region51: #{tpu_custom_call.1} parent=47 // pred_region
          %s756 = smul.u32 2, %s23
          %s758 = ssub.s32 32, 32
          %759 = vsyncadd %s749, %s758
          %s760 = smul.addr %s756, 16
          %s761 = scalar_lea.hbm %s7, %s760
          %s763 = sshll.u32 %s752, 4
          %s764 = int_to_ptr.vmem [resolvable:$true] %s763
          %766 = dma.vmem_to_hbm [thread:$0]  %s764, 32, %s761, %s749
        $region52: #{tpu_custom_call.1} parent=47 // pred_fallthru
          _
      $region48: #{tpu_custom_call.1} parent=5 // pred_fallthru
        _
      %p767 = scmp.le.s32.totalorder 2, %s18
      // Predicated region
      $region53: #{tpu_custom_call.1} parent=5 // pred_check
        %p768 = pneg %p767
      $region54: #{tpu_custom_call.1} parent=5 // pred_check_branch
        %770 = sbr.rel (%p768) target = $region56
      $region55: #{tpu_custom_call.1} parent=5 // pred_region
        %s771 = ssub.s32 %s18, 2
        // Predicated region
        $region57: #{tpu_custom_call.1} parent=55 // pred_check
          %p772 = pneg %p199
        $region58: #{tpu_custom_call.1} parent=55 // pred_check_branch
          %774 = sbr.rel (%p772) target = $region60
        $region59: #{tpu_custom_call.1} parent=55 // pred_region
          %s775 = sand.u32 %s184, 1
          %s776 = scalar_lea.sflag [#allocation4], %s775
          %s777 = sand.u32 %s184, 1
          %s778 = smul.addr %s777, 2
          %s779 = scalar_lea.vmem [#allocation3], %s778
          %780 = dma.done %s776, 32
        $region60: #{tpu_custom_call.1} parent=55 // pred_fallthru
          _
      $region56: #{tpu_custom_call.1} parent=5 // pred_fallthru
        _
    $region6: #{tpu_custom_call.1} parent=1 // loop_footer
      %s22 = sadd.s32 1, %s18
    $region7: #{tpu_custom_call.1} parent=1 // loop_footer_branch
      %17 = sbr.rel target = $region3
    $region8: #{tpu_custom_call.1} parent=1 // loop_exit
      _
    %781 = vsyncpa [#allocation4], 1
    %s782 = scalar_lea.sflag [#allocation4], 1
    %783 = vsyncpa %s782, 1

</llo_original>
